<compile_context>
chip_gen: v7x
topology: tpu7x:2x2x1
jax: 0.10.0
libtpu: 0.0.40
codegen_flags: <defaults>
</compile_context>

<pallas_src>
import jax
import jax.numpy as jnp
from jax import lax
from jax.experimental import pallas as pl
from jax.experimental.pallas import tpu as pltpu

EPS = 1e-5


def _encoder_kernel(x_ref, w1_ref, w2_ref, vec_ref, out_ref):
    B = x_ref.shape[0]
    H1 = w1_ref.shape[1]
    H2 = w2_ref.shape[1]
    inv_b = 1.0 / B

    # Static, lane-aligned views into the packed small-vector slab [1, H1 + 3*H2].
    b1 = vec_ref[:, 0:H1]                          # [1, 256]
    b2 = vec_ref[:, H1:H1 + H2]                    # [1, 128]
    g2 = vec_ref[:, H1 + H2:H1 + 2 * H2]           # [1, 128]
    beta2 = vec_ref[:, H1 + 2 * H2:H1 + 3 * H2]    # [1, 128]

    # ---- Block 1: Linear -> ReLU -> BN normalize (gamma1/beta1 folded into W2/b2) ----
    # x arrives f32; cast to bf16 in-kernel (cheap VPU work hidden under MXU/DMA).
    h = jnp.dot(x_ref[...].astype(w1_ref.dtype), w1_ref[...],
                preferred_element_type=jnp.float32)
    h = jnp.maximum(h + b1, 0.0)                                 # f32 [B, H1]

    mean1 = jnp.sum(h, axis=0, keepdims=True) * inv_b            # one-pass stats
    var1 = jnp.sum(h * h, axis=0, keepdims=True) * inv_b - mean1 * mean1
    var1 = jnp.maximum(var1, 0.0)                                # guard cancellation
    scale1 = lax.rsqrt(var1 + EPS)                               # EUP slot (cheap)
    shift1 = -mean1 * scale1
    h = h * scale1 + shift1                                      # 2 VPU ops / element
    # Dropout (eval) = identity.

    # ---- Block 2: Linear -> ReLU -> BatchNorm1d (full affine) ----
    h2 = jnp.dot(h.astype(w2_ref.dtype), w2_ref[...],
                 preferred_element_type=jnp.float32)
    h2 = jnp.maximum(h2 + b2, 0.0)                               # f32 [B, H2]

    mean2 = jnp.sum(h2, axis=0, keepdims=True) * inv_b
    var2 = jnp.sum(h2 * h2, axis=0, keepdims=True) * inv_b - mean2 * mean2
    var2 = jnp.maximum(var2, 0.0)
    scale2 = g2 * lax.rsqrt(var2 + EPS)
    shift2 = beta2 - mean2 * scale2
    out_ref[...] = (h2 * scale2 + shift2).astype(out_ref.dtype)
    # Dropout (eval) = identity.


def prepare_params(params, use_bf16=True):
    """Fold BN1's affine into layer 2, cast matmul weights for the MXU, pack small vectors.

    (xhat * g1 + beta1) @ W2 + b2  ==  xhat @ (g1^T * W2) + (beta1 @ W2 + b2)
    """
    w1, b1 = params["w1"], params["b1"]
    w2, b2 = params["w2"], params["b2"]
    g1, beta1 = params["g1"], params["beta1"]
    g2, beta2 = params["g2"], params["beta2"]

    w2_folded = w2 * g1.reshape(-1, 1)          # scale rows of W2 by gamma1
    b2_folded = b2 + beta1 @ w2                 # absorb beta1 (uses original W2)

    mm_dtype = jnp.bfloat16 if use_bf16 else jnp.float32

    # One lane-aligned f32 slab: [1, H1 + 3*H2] = [1, 640]; offsets 0/256/384/512.
    vec = jnp.concatenate([b1, b2_folded, g2, beta2], axis=1).astype(jnp.float32)

    return {
        "w1": w1.astype(mm_dtype),
        "w2": w2_folded.astype(mm_dtype),
        "vec": vec,
        # f32 copies kept only for the pure-JAX reference mirrors:
        "b1": b1, "b2": b2_folded, "g2": g2, "beta2": beta2,
        "mm_dtype": mm_dtype,
    }


def feature_encoder(x, prepared, out_dtype=jnp.float32):
    """x: [B, input_dim] float32.  prepared: output of prepare_params()."""
    B, in_dim = x.shape
    H1 = prepared["w1"].shape[1]
    H2 = prepared["w2"].shape[1]

    vmem_spec = pl.BlockSpec(memory_space=pltpu.MemorySpace.VMEM)

    # Advisory cost hint so XLA does not schedule conservatively around this tiny call.
    flops = 2 * B * (in_dim * H1 + H1 * H2) + 10 * B * (H1 + H2)
    bytes_accessed = (x.size * x.dtype.itemsize
                      + prepared["w1"].size * prepared["w1"].dtype.itemsize
                      + prepared["w2"].size * prepared["w2"].dtype.itemsize
                      + prepared["vec"].size * 4
                      + B * H2 * jnp.dtype(out_dtype).itemsize)
    cost = pl.CostEstimate(flops=int(flops),
                           transcendentals=int(H1 + H2),
                           bytes_accessed=int(bytes_accessed))

    return pl.pallas_call(
        _encoder_kernel,
        out_shape=jax.ShapeDtypeStruct((B, H2), out_dtype),
        in_specs=[vmem_spec] * 4,
        out_specs=vmem_spec,
        cost_estimate=cost,
    )(x, prepared["w1"], prepared["w2"], prepared["vec"])


def init_params(key, input_dim, hidden_dims):
    """nn.Linear-shaped params; weights stored transposed: [in, out].
    gamma/beta are random (not PyTorch's 1/0 defaults) so the BN1->W2 fold is exercised."""
    params = {}
    dims = [input_dim] + list(hidden_dims)
    for i in range(len(hidden_dims)):
        fan_in, fan_out = dims[i], dims[i + 1]
        key, kw, kb, kg, kbeta = jax.random.split(key, 5)
        bound = 1.0 / jnp.sqrt(fan_in)
        params[f"w{i + 1}"] = jax.random.uniform(kw, (fan_in, fan_out), jnp.float32, -bound, bound)
        params[f"b{i + 1}"] = jax.random.uniform(kb, (1, fan_out), jnp.float32, -bound, bound)
        params[f"g{i + 1}"] = jax.random.uniform(kg, (1, fan_out), jnp.float32, 0.5, 1.5)
        params[f"beta{i + 1}"] = 0.1 * jax.random.normal(kbeta, (1, fan_out), jnp.float32)
    return params


def feature_encoder_math_ref(x, params):
    """Pure-JAX f32 reference of the original (unfolded) PyTorch math."""
    h = x
    for i in (1, 2):
        h = jnp.maximum(h @ params[f"w{i}"] + params[f"b{i}"], 0.0)
        mean = jnp.mean(h, axis=0, keepdims=True)
        var = jnp.mean((h - mean) ** 2, axis=0, keepdims=True)
        h = (h - mean) / jnp.sqrt(var + EPS) * params[f"g{i}"] + params[f"beta{i}"]
    return h


def feature_encoder_exact_ref(x, prepared):
    """Pure-JAX mirror of the kernel's exact computation (same casts, same fold)."""
    inv_b = 1.0 / x.shape[0]
    h = jnp.dot(x.astype(prepared["mm_dtype"]), prepared["w1"],
                preferred_element_type=jnp.float32)
    h = jnp.maximum(h + prepared["b1"], 0.0)
    mean1 = jnp.sum(h, axis=0, keepdims=True) * inv_b
    var1 = jnp.maximum(jnp.sum(h * h, axis=0, keepdims=True) * inv_b - mean1 * mean1, 0.0)
    scale1 = lax.rsqrt(var1 + EPS)
    h = h * scale1 + (-mean1 * scale1)

    h2 = jnp.dot(h.astype(prepared["mm_dtype"]), prepared["w2"],
                 preferred_element_type=jnp.float32)
    h2 = jnp.maximum(h2 + prepared["b2"], 0.0)
    mean2 = jnp.sum(h2, axis=0, keepdims=True) * inv_b
    var2 = jnp.maximum(jnp.sum(h2 * h2, axis=0, keepdims=True) * inv_b - mean2 * mean2, 0.0)
    scale2 = prepared["g2"] * lax.rsqrt(var2 + EPS)
    shift2 = prepared["beta2"] - mean2 * scale2
    return h2 * scale2 + shift2


if __name__ == "__main__":
    key = jax.random.PRNGKey(0)
    B, INPUT_DIM = 8, 32
    HIDDEN_DIMS = [256, 128]

    key, kx, kp = jax.random.split(key, 3)
    x = jax.random.normal(kx, (B, INPUT_DIM), jnp.float32)
    params = init_params(kp, INPUT_DIM, HIDDEN_DIMS)
    prepared = prepare_params(params, use_bf16=True)

    out = jax.block_until_ready(feature_encoder(x, prepared))
    assert out.shape == (B, HIDDEN_DIMS[-1]), out.shape

    # Tight check against a cast/fold-matched pure-JAX mirror of the kernel.
    exact = feature_encoder_exact_ref(x, prepared)
    assert jnp.allclose(out, exact, atol=2e-3, rtol=2e-3), "mismatch vs exact mirror"

    # Loose sanity check against the original f32 math (bf16 matmul operands -> ~1e-2 error).
    ref = feature_encoder_math_ref(x, params)
    assert jnp.allclose(out, ref, atol=5e-2, rtol=5e-2), "mismatch vs f32 math reference"

    print("KERNEL_OK")
</pallas_src>

<mosaic_0001>
module attributes {stable_mosaic.version = 11 : i64} {
  func.func @_encoder_kernel(%arg0: memref<8x32xf32, #tpu.memory_space<vmem>>, %arg1: memref<32x256xbf16, #tpu.memory_space<vmem>>, %arg2: memref<256x128xbf16, #tpu.memory_space<vmem>>, %arg3: memref<1x640xf32, #tpu.memory_space<vmem>>, %arg4: memref<8x128xf32, #tpu.memory_space<vmem>>) attributes {dimension_semantics = [], scalar_prefetch = 0 : i64, scratch_operands = 0 : i64, tpu.core_type = #tpu.core_type<tc>} {
    %c0 = arith.constant 0 : index
    %c0_0 = arith.constant 0 : index
    %0 = vector.load %arg3[%c0, %c0_0] : memref<1x640xf32, #tpu.memory_space<vmem>>, vector<1x256xf32>
    %c0_1 = arith.constant 0 : index
    %c256 = arith.constant 256 : index
    %1 = vector.load %arg3[%c0_1, %c256] : memref<1x640xf32, #tpu.memory_space<vmem>>, vector<1x128xf32>
    %c0_2 = arith.constant 0 : index
    %c384 = arith.constant 384 : index
    %2 = vector.load %arg3[%c0_2, %c384] : memref<1x640xf32, #tpu.memory_space<vmem>>, vector<1x128xf32>
    %c0_3 = arith.constant 0 : index
    %c512 = arith.constant 512 : index
    %3 = vector.load %arg3[%c0_3, %c512] : memref<1x640xf32, #tpu.memory_space<vmem>>, vector<1x128xf32>
    %c0_4 = arith.constant 0 : index
    %c0_5 = arith.constant 0 : index
    %4 = vector.load %arg0[%c0_4, %c0_5] : memref<8x32xf32, #tpu.memory_space<vmem>>, vector<8x32xf32>
    %5 = arith.truncf %4 : vector<8x32xf32> to vector<8x32xbf16>
    %c0_6 = arith.constant 0 : index
    %c0_7 = arith.constant 0 : index
    %6 = vector.load %arg1[%c0_6, %c0_7] : memref<32x256xbf16, #tpu.memory_space<vmem>>, vector<32x256xbf16>
    %cst = arith.constant dense<0.000000e+00> : vector<8x256xf32>
    %7 = tpu.matmul %5, %6, %cst {dimension_numbers = #tpu.dot_dimension_numbers<[1], [0], [0], [1], [0, 0, 1, 1], [], []>} : vector<8x32xbf16>, vector<32x256xbf16>, vector<8x256xf32> -> vector<8x256xf32>
    %8 = vector.broadcast %0 : vector<1x256xf32> to vector<8x256xf32>
    %9 = arith.addf %7, %8 : vector<8x256xf32>
    %cst_8 = arith.constant 0.000000e+00 : f32
    %10 = vector.broadcast %cst_8 : f32 to vector<8x256xf32>
    %11 = arith.maximumf %9, %10 : vector<8x256xf32>
    %cst_9 = arith.constant dense<0.000000e+00> : vector<256xf32>
    %12 = vector.multi_reduction <add>, %11, %cst_9 [0] : vector<8x256xf32> to vector<256xf32>
    %13 = vector.shape_cast %12 : vector<256xf32> to vector<1x256xf32>
    %cst_10 = arith.constant 1.250000e-01 : f32
    %14 = vector.broadcast %cst_10 : f32 to vector<1x256xf32>
    %15 = arith.mulf %13, %14 : vector<1x256xf32>
    %16 = arith.mulf %11, %11 : vector<8x256xf32>
    %cst_11 = arith.constant dense<0.000000e+00> : vector<256xf32>
    %17 = vector.multi_reduction <add>, %16, %cst_11 [0] : vector<8x256xf32> to vector<256xf32>
    %18 = vector.shape_cast %17 : vector<256xf32> to vector<1x256xf32>
    %cst_12 = arith.constant 1.250000e-01 : f32
    %19 = vector.broadcast %cst_12 : f32 to vector<1x256xf32>
    %20 = arith.mulf %18, %19 : vector<1x256xf32>
    %21 = arith.mulf %15, %15 : vector<1x256xf32>
    %22 = arith.subf %20, %21 : vector<1x256xf32>
    %cst_13 = arith.constant 0.000000e+00 : f32
    %23 = vector.broadcast %cst_13 : f32 to vector<1x256xf32>
    %24 = arith.maximumf %22, %23 : vector<1x256xf32>
    %cst_14 = arith.constant 9.99999974E-6 : f32
    %25 = vector.broadcast %cst_14 : f32 to vector<1x256xf32>
    %26 = arith.addf %24, %25 : vector<1x256xf32>
    %27 = math.rsqrt %26 : vector<1x256xf32>
    %cst_15 = arith.constant 0.000000e+00 : f32
    %28 = vector.broadcast %cst_15 : f32 to vector<1x256xf32>
    %29 = arith.subf %28, %15 : vector<1x256xf32>
    %30 = arith.mulf %29, %27 : vector<1x256xf32>
    %31 = vector.broadcast %27 : vector<1x256xf32> to vector<8x256xf32>
    %32 = arith.mulf %11, %31 : vector<8x256xf32>
    %33 = vector.broadcast %30 : vector<1x256xf32> to vector<8x256xf32>
    %34 = arith.addf %32, %33 : vector<8x256xf32>
    %35 = arith.truncf %34 : vector<8x256xf32> to vector<8x256xbf16>
    %c0_16 = arith.constant 0 : index
    %c0_17 = arith.constant 0 : index
    %36 = vector.load %arg2[%c0_16, %c0_17] : memref<256x128xbf16, #tpu.memory_space<vmem>>, vector<256x128xbf16>
    %cst_18 = arith.constant dense<0.000000e+00> : vector<8x128xf32>
    %37 = tpu.matmul %35, %36, %cst_18 {dimension_numbers = #tpu.dot_dimension_numbers<[1], [0], [0], [1], [0, 0, 1, 1], [], []>} : vector<8x256xbf16>, vector<256x128xbf16>, vector<8x128xf32> -> vector<8x128xf32>
    %38 = vector.broadcast %1 : vector<1x128xf32> to vector<8x128xf32>
    %39 = arith.addf %37, %38 : vector<8x128xf32>
    %cst_19 = arith.constant 0.000000e+00 : f32
    %40 = vector.broadcast %cst_19 : f32 to vector<8x128xf32>
    %41 = arith.maximumf %39, %40 : vector<8x128xf32>
    %cst_20 = arith.constant dense<0.000000e+00> : vector<128xf32>
    %42 = vector.multi_reduction <add>, %41, %cst_20 [0] : vector<8x128xf32> to vector<128xf32>
    %43 = vector.shape_cast %42 : vector<128xf32> to vector<1x128xf32>
    %cst_21 = arith.constant 1.250000e-01 : f32
    %44 = vector.broadcast %cst_21 : f32 to vector<1x128xf32>
    %45 = arith.mulf %43, %44 : vector<1x128xf32>
    %46 = arith.mulf %41, %41 : vector<8x128xf32>
    %cst_22 = arith.constant dense<0.000000e+00> : vector<128xf32>
    %47 = vector.multi_reduction <add>, %46, %cst_22 [0] : vector<8x128xf32> to vector<128xf32>
    %48 = vector.shape_cast %47 : vector<128xf32> to vector<1x128xf32>
    %cst_23 = arith.constant 1.250000e-01 : f32
    %49 = vector.broadcast %cst_23 : f32 to vector<1x128xf32>
    %50 = arith.mulf %48, %49 : vector<1x128xf32>
    %51 = arith.mulf %45, %45 : vector<1x128xf32>
    %52 = arith.subf %50, %51 : vector<1x128xf32>
    %cst_24 = arith.constant 0.000000e+00 : f32
    %53 = vector.broadcast %cst_24 : f32 to vector<1x128xf32>
    %54 = arith.maximumf %52, %53 : vector<1x128xf32>
    %cst_25 = arith.constant 9.99999974E-6 : f32
    %55 = vector.broadcast %cst_25 : f32 to vector<1x128xf32>
    %56 = arith.addf %54, %55 : vector<1x128xf32>
    %57 = math.rsqrt %56 : vector<1x128xf32>
    %58 = arith.mulf %2, %57 : vector<1x128xf32>
    %59 = arith.mulf %45, %58 : vector<1x128xf32>
    %60 = arith.subf %3, %59 : vector<1x128xf32>
    %61 = vector.broadcast %58 : vector<1x128xf32> to vector<8x128xf32>
    %62 = arith.mulf %41, %61 : vector<8x128xf32>
    %63 = vector.broadcast %60 : vector<1x128xf32> to vector<8x128xf32>
    %64 = arith.addf %62, %63 : vector<8x128xf32>
    %c0_26 = arith.constant 0 : index
    %c0_27 = arith.constant 0 : index
    %65 = vector.load %arg4[%c0_26, %c0_27] : memref<8x128xf32, #tpu.memory_space<vmem>>, vector<8x128xf32>
    tpu.vector_store %arg4[%c0_26, %c0_27], %64 {strides = array<i32>} : memref<8x128xf32, #tpu.memory_space<vmem>>, vector<8x128xf32>,
    return
  }
}

</mosaic_0001>

<llo_original>
// kernel: tpu_custom_call.1
$region0: #{tpu_custom_call.1}
  #allocation0 [shape = 'u32[]', space=smem, size = 0x4, offset = 0x4, fixed_abs, tag = 'smem constant byte address 0x4 - core index']
  #allocation1 [shape = 'u32[144,128]{1,0:T(1,128)}', space=vmem, size = 0x12000, scoped, tag = 'internal scratch']
  %s0 = inlined_call_operand.hbm [shape: f32[8,32], index: 0, kind: input, shape index: {}]
  %s1 = inlined_call_operand.hbm [shape: bf16[32,256], index: 1, kind: input, shape index: {}]
  %s2 = inlined_call_operand.hbm [shape: bf16[256,128], index: 2, kind: input, shape index: {}]
  %s3 = inlined_call_operand.vmem [shape: f32[1,640], index: 3, kind: input, shape index: {}]
  %s4 = inlined_call_operand.hbm [shape: f32[8,128], index: 4, kind: output, shape index: {}]
  %s5 = sld [smem:[#allocation0]]
  $region38: #{tpu_custom_call.1} parent=0
    _
  %s7 = ssub.s32 1, %s5
  %s8 = scalar_select 0, %s7, %s5
  $region1: #{tpu_custom_call.1} parent=0
    #allocation2 [shape = 'u8[4096]{0}', space=vmem, size = 0x1000, scoped, tag = 'input window, operand 0, single buffered']
    #allocation3 [shape = 's32[1]{0}', space=sflag, size = 0x4, scoped, tag = 'scoped memory for tpu_custom_call.1']
    #allocation4 [shape = 's32[1]{0}', space=sflag, size = 0x4, scoped, tag = 'scoped memory for tpu_custom_call.1']
    #allocation5 [shape = 'u8[16384]{0}', space=vmem, size = 0x4000, scoped, tag = 'input window, operand 1, single buffered']
    #allocation6 [shape = 's32[1]{0}', space=sflag, size = 0x4, scoped, tag = 'scoped memory for tpu_custom_call.1']
    #allocation7 [shape = 'u8[65536]{0}', space=vmem, size = 0x10000, scoped, tag = 'input window, operand 2, single buffered']
    #allocation8 [shape = 'u8[4096]{0}', space=vmem, size = 0x1000, scoped, tag = 'output window, operand 0, single buffered']
    %9 = vsyncpa [#allocation3], 0
    %10 = vsyncpa [#allocation6], 0
    %11 = vsyncpa [#allocation4], 0
    // Predicated region
    $region2: #{tpu_custom_call.1} parent=1 // pred_check
      _
    $region3: #{tpu_custom_call.1} parent=1 // pred_check_branch
      %13 = sbr.rel (0) target = $region5
    $region4: #{tpu_custom_call.1} parent=1 // pred_region
      %s15 = ssub.s32 128, 128
      %16 = vsyncadd [#allocation3], %s15
      %s18 = sshll.u32 [#allocation2], 4
      %s19 = int_to_ptr.vmem [resolvable:$true] %s18
      %21 = dma.hbm_to_vmem [thread:$0]  %s0, 128, %s19, [#allocation3]
    $region5: #{tpu_custom_call.1} parent=1 // pred_fallthru
      _
    // Predicated region
    $region6: #{tpu_custom_call.1} parent=1 // pred_check
      _
    $region7: #{tpu_custom_call.1} parent=1 // pred_check_branch
      %23 = sbr.rel (0) target = $region9
    $region8: #{tpu_custom_call.1} parent=1 // pred_region
      %s25 = ssub.s32 512, 512
      %26 = vsyncadd [#allocation6], %s25
      %s27 = sshll.u32 [#allocation5], 4
      %s28 = int_to_ptr.vmem [resolvable:$true] %s27
      %33 = dma.hbm_to_vmem [thread:$0]  %s1, 512, %s28, [#allocation6], 128, 128, 8
    $region9: #{tpu_custom_call.1} parent=1 // pred_fallthru
      _
    // Predicated region
    $region10: #{tpu_custom_call.1} parent=1 // pred_check
      _
    $region11: #{tpu_custom_call.1} parent=1 // pred_check_branch
      %35 = sbr.rel (0) target = $region13
    $region12: #{tpu_custom_call.1} parent=1 // pred_region
      %s37 = ssub.s32 2048, 2048
      %38 = vsyncadd [#allocation6], %s37
      %s39 = sshll.u32 [#allocation7], 4
      %s40 = int_to_ptr.vmem [resolvable:$true] %s39
      %45 = dma.hbm_to_vmem [thread:$0]  %s2, 2048, %s40, [#allocation6], 64, 64, 4
    $region13: #{tpu_custom_call.1} parent=1 // pred_fallthru
      _
    // Predicated region
    $region14: #{tpu_custom_call.1} parent=1 // pred_check
      _
    $region15: #{tpu_custom_call.1} parent=1 // pred_check_branch
      %47 = sbr.rel (0) target = $region17
    $region16: #{tpu_custom_call.1} parent=1 // pred_region
      _
    $region17: #{tpu_custom_call.1} parent=1 // pred_fallthru
      _
    // Predicated region
    $region18: #{tpu_custom_call.1} parent=1 // pred_check
      _
    $region19: #{tpu_custom_call.1} parent=1 // pred_check_branch
      %49 = sbr.rel (0) target = $region21
    $region20: #{tpu_custom_call.1} parent=1 // pred_region
      %50 = dma.done [#allocation3], 128
    $region21: #{tpu_custom_call.1} parent=1 // pred_fallthru
      _
    // Predicated region
    $region22: #{tpu_custom_call.1} parent=1 // pred_check
      _
    $region23: #{tpu_custom_call.1} parent=1 // pred_check_branch
      %52 = sbr.rel (0) target = $region25
    $region24: #{tpu_custom_call.1} parent=1 // pred_region
      %53 = dma.done [#allocation6], 512
    $region25: #{tpu_custom_call.1} parent=1 // pred_fallthru
      _
    // Predicated region
    $region26: #{tpu_custom_call.1} parent=1 // pred_check
      _
    $region27: #{tpu_custom_call.1} parent=1 // pred_check_branch
      %55 = sbr.rel (0) target = $region29
    $region28: #{tpu_custom_call.1} parent=1 // pred_region
      %56 = dma.done [#allocation6], 2048
    $region29: #{tpu_custom_call.1} parent=1 // pred_fallthru
      _
    %v58 = vld [vmem:[%s3] sm:$0x3]
    %v59 = vld [vmem:[%s3 + $0x2] sm:$0x1]
    %v60 = vld [vmem:[%s3 + $0x3] sm:$0x1]
    %v61 = vld [vmem:[%s3 + $0x4] sm:$0x1]
    %v62 = vld [vmem:[#allocation2] sm:$0xff]
    %v63 = vpack.c.bf16 %v62, %v62
    %v64 = vld [vmem:[#allocation5] sm:$0xff]
    %v65 = vld [vmem:[#allocation5 + $0x8] sm:$0xff]
    %v66 = vld [vmem:[#allocation5 + $0x10] sm:$0xff]
    %v67 = vld [vmem:[#allocation5 + $0x18] sm:$0xff]
    %v69 = vlaneseq
    %v70 = vshrl.u32 %v69, 7
    %v71 = vsub.s32 0, %v70
    %v72 = vrot.slane %v58, %v71
    %v73 = vlaneseq
    %v74 = vshrl.u32 %v73, 7
    %v75 = vsub.s32 1, %v74
    %v76 = vrot.slane %v58, %v75
    %v83 = vunpack.c.l.b16 %v64
    %v84 = vunpack.c.h.b16 %v64
    %v85 = vunpack.c.l.b16 %v65
    %v86 = vunpack.c.h.b16 %v65
    %v87 = vunpack.c.l.b16 %v66
    %v88 = vunpack.c.h.b16 %v66
    %v89 = vunpack.c.l.b16 %v67
    %v90 = vunpack.c.h.b16 %v67
    %v91 = vpack.c.b16 %v85, %v83
    %v92 = vpack.c.b16 %v86, %v84
    %v93 = vpack.c.b16 %v89, %v87
    %v94 = vpack.c.b16 %v90, %v88
    %vm99 = vcmask 261120
    %v101 = vsel %vm99, %v63, 0
    %103 = vmatprep.subr.bf16.mxu0 %v92
    %104 = vmatpush1.bf16.msra.mxu0 %v91
    %105 = vmatprep.subr.bf16.mxu0 %v94
    %106 = vmatpush1.bf16.msra.mxu0 %v93
    %107 = vmatprep.subr.bf16.mxu0 0
    %108 = vmatpush1.bf16.msra.mxu0 0
    %109 = vmatprep.subr.bf16.mxu0 0
    %110 = vmatpush1.bf16.msra.mxu0 0
    %111 = vmatprep.subr.bf16.mxu0 0
    %112 = vmatpush1.bf16.msra.mxu0 0
    %113 = vmatprep.subr.bf16.mxu0 0
    %114 = vmatpush1.bf16.msra.mxu0 0
    %115 = vmatprep.subr.bf16.mxu0 0
    %116 = vmatpush1.bf16.msra.mxu0 0
    %117 = vmatprep.subr.bf16.mxu0 0
    %118 = vmatpush1.bf16.msra.mxu0 0
    %119 = vmatprep.subr.bf16.mxu0 0
    %120 = vmatpush1.bf16.msra.mxu0 0
    %121 = vmatprep.subr.bf16.mxu0 0
    %122 = vmatpush1.bf16.msra.mxu0 0
    %123 = vmatprep.subr.bf16.mxu0 0
    %124 = vmatpush1.bf16.msra.mxu0 0
    %125 = vmatprep.subr.bf16.mxu0 0
    %126 = vmatpush1.bf16.msra.mxu0 0
    %127 = vmatprep.subr.bf16.mxu0 0
    %128 = vmatpush1.bf16.msra.mxu0 0
    %129 = vmatprep.subr.bf16.mxu0 0
    %130 = vmatpush1.bf16.msra.mxu0 0
    %131 = vmatprep.subr.bf16.mxu0 0
    %132 = vmatpush1.bf16.msra.mxu0 0
    %133 = vmatprep.subr.bf16.mxu0 0
    %134 = vmatpush1.bf16.msra.mxu0 0
    %135 = vmatprep.mubr.bf16.mxu0 0
    %136 = vmatmul.mubr.bf16.gmra.mrb[0].mxu0 %v101
    %v137 = vpop.f32.mrb[0].mxu0
    %v138 = vadd.f32 %v72, %v137
    %v139 = vpop.f32.mrb[0].mxu0
    %v140 = vadd.f32 %v76, %v139
    %v141 = vpop.f32.mrb[0].mxu0
    %v142 = vpop.f32.mrb[0].mxu0
    %143 = vdwg.mxu0
    %v144 = vmax.f32 %v138, 0.0
    %v145 = vmax.f32 %v140, 0.0
    %v146 = vrot.slane %v144, 4
    %v147 = vadd.f32 %v144, %v146
    %v148 = vrot.slane %v147, 2
    %v149 = vadd.f32 %v147, %v148
    %v150 = vrot.slane %v149, 1
    %v151 = vadd.f32 %v149, %v150
    %v152 = vrot.slane %v145, 4
    %v153 = vadd.f32 %v145, %v152
    %v154 = vrot.slane %v153, 2
    %v155 = vadd.f32 %v153, %v154
    %v156 = vrot.slane %v155, 1
    %v157 = vadd.f32 %v155, %v156
    %v158 = vmul.f32 %v151, 0.125
    %v159 = vmul.f32 %v157, 0.125
    %v160 = vmul.f32 %v144, %v144
    %v161 = vmul.f32 %v145, %v145
    %v162 = vrot.slane %v160, 4
    %v163 = vadd.f32 %v160, %v162
    %v164 = vrot.slane %v163, 2
    %v165 = vadd.f32 %v163, %v164
    %v166 = vrot.slane %v165, 1
    %v167 = vadd.f32 %v165, %v166
    %v168 = vrot.slane %v161, 4
    %v169 = vadd.f32 %v161, %v168
    %v170 = vrot.slane %v169, 2
    %v171 = vadd.f32 %v169, %v170
    %v172 = vrot.slane %v171, 1
    %v173 = vadd.f32 %v171, %v172
    %v174 = vmul.f32 %v167, 0.125
    %v175 = vmul.f32 %v173, 0.125
    %v176 = vmul.f32 %v158, %v158
    %v177 = vmul.f32 %v159, %v159
    %v178 = vsub.f32 %v174, %v176
    %v179 = vsub.f32 %v175, %v177
    %v180 = vmax.f32 %v178, 0.0
    %v181 = vmax.f32 %v179, 0.0
    %v182 = vadd.f32 %v180, 1e-05
    %v183 = vadd.f32 %v181, 1e-05
    %v184 = vrsqrt.pop %v182
    %v185 = vrsqrt.pop %v183
    %v186 = vsub.f32 0.0, %v158
    %v187 = vsub.f32 0.0, %v159
    %v188 = vmul.f32 %v186, %v184
    %v189 = vmul.f32 %v187, %v185
    %v190 = vmul.f32 %v144, %v184
    %v191 = vmul.f32 %v145, %v185
    %v192 = vadd.f32 %v190, %v188
    %v193 = vadd.f32 %v191, %v189
    %v194 = vpack.c.bf16 %v192, %v192
    %v195 = vpack.c.bf16 %v193, %v193
    %v196 = vld [vmem:[#allocation7] sm:$0xf]
    %v197 = vld [vmem:[#allocation7 + $0x4] sm:$0xf]
    %v198 = vld [vmem:[#allocation7 + $0x8] sm:$0xf]
    %v199 = vld [vmem:[#allocation7 + $0xc] sm:$0xf]
    %v200 = vld [vmem:[#allocation7 + $0x10] sm:$0xf]
    %v201 = vld [vmem:[#allocation7 + $0x14] sm:$0xf]
    %v202 = vld [vmem:[#allocation7 + $0x18] sm:$0xf]
    %v203 = vld [vmem:[#allocation7 + $0x1c] sm:$0xf]
    %v204 = vld [vmem:[#allocation7 + $0x20] sm:$0xf]
    %v205 = vld [vmem:[#allocation7 + $0x24] sm:$0xf]
    %v206 = vld [vmem:[#allocation7 + $0x28] sm:$0xf]
    %v207 = vld [vmem:[#allocation7 + $0x2c] sm:$0xf]
    %v208 = vld [vmem:[#allocation7 + $0x30] sm:$0xf]
    %v209 = vld [vmem:[#allocation7 + $0x34] sm:$0xf]
    %v210 = vld [vmem:[#allocation7 + $0x38] sm:$0xf]
    %v211 = vld [vmem:[#allocation7 + $0x3c] sm:$0xf]
    %v212 = vld [vmem:[#allocation7 + $0x40] sm:$0xf]
    %v213 = vld [vmem:[#allocation7 + $0x44] sm:$0xf]
    %v214 = vld [vmem:[#allocation7 + $0x48] sm:$0xf]
    %v215 = vld [vmem:[#allocation7 + $0x4c] sm:$0xf]
    %v216 = vld [vmem:[#allocation7 + $0x50] sm:$0xf]
    %v217 = vld [vmem:[#allocation7 + $0x54] sm:$0xf]
    %v218 = vld [vmem:[#allocation7 + $0x58] sm:$0xf]
    %v219 = vld [vmem:[#allocation7 + $0x5c] sm:$0xf]
    %v220 = vld [vmem:[#allocation7 + $0x60] sm:$0xf]
    %v221 = vld [vmem:[#allocation7 + $0x64] sm:$0xf]
    %v222 = vld [vmem:[#allocation7 + $0x68] sm:$0xf]
    %v223 = vld [vmem:[#allocation7 + $0x6c] sm:$0xf]
    %v224 = vld [vmem:[#allocation7 + $0x70] sm:$0xf]
    %v225 = vld [vmem:[#allocation7 + $0x74] sm:$0xf]
    %v226 = vld [vmem:[#allocation7 + $0x78] sm:$0xf]
    %v227 = vld [vmem:[#allocation7 + $0x7c] sm:$0xf]
    %v229 = vlaneseq
    %v230 = vshrl.u32 %v229, 7
    %v231 = vsub.s32 0, %v230
    %v232 = vrot.slane %v59, %v231
    %v266 = vunpack.c.l.b16 %v196
    %v267 = vunpack.c.l.b16 %v197
    %v268 = vunpack.c.l.b16 %v198
    %v269 = vunpack.c.l.b16 %v199
    %v270 = vunpack.c.l.b16 %v200
    %v271 = vunpack.c.l.b16 %v201
    %v272 = vunpack.c.l.b16 %v202
    %v273 = vunpack.c.l.b16 %v203
    %v274 = vunpack.c.l.b16 %v204
    %v275 = vunpack.c.l.b16 %v205
    %v276 = vunpack.c.l.b16 %v206
    %v277 = vunpack.c.l.b16 %v207
    %v278 = vunpack.c.l.b16 %v208
    %v279 = vunpack.c.l.b16 %v209
    %v280 = vunpack.c.l.b16 %v210
    %v281 = vunpack.c.l.b16 %v211
    %v282 = vunpack.c.l.b16 %v212
    %v283 = vunpack.c.l.b16 %v213
    %v284 = vunpack.c.l.b16 %v214
    %v285 = vunpack.c.l.b16 %v215
    %v286 = vunpack.c.l.b16 %v216
    %v287 = vunpack.c.l.b16 %v217
    %v288 = vunpack.c.l.b16 %v218
    %v289 = vunpack.c.l.b16 %v219
    %v290 = vunpack.c.l.b16 %v220
    %v291 = vunpack.c.l.b16 %v221
    %v292 = vunpack.c.l.b16 %v222
    %v293 = vunpack.c.l.b16 %v223
    %v294 = vunpack.c.l.b16 %v224
    %v295 = vunpack.c.l.b16 %v225
    %v296 = vunpack.c.l.b16 %v226
    %v297 = vunpack.c.l.b16 %v227
    %v298 = vpack.c.b16 %v267, %v266
    %v299 = vpack.c.b16 %v269, %v268
    %v300 = vpack.c.b16 %v271, %v270
    %v301 = vpack.c.b16 %v273, %v272
    %v302 = vpack.c.b16 %v275, %v274
    %v303 = vpack.c.b16 %v277, %v276
    %v304 = vpack.c.b16 %v279, %v278
    %v305 = vpack.c.b16 %v281, %v280
    %v306 = vpack.c.b16 %v283, %v282
    %v307 = vpack.c.b16 %v285, %v284
    %v308 = vpack.c.b16 %v287, %v286
    %v309 = vpack.c.b16 %v289, %v288
    %v310 = vpack.c.b16 %v291, %v290
    %v311 = vpack.c.b16 %v293, %v292
    %v312 = vpack.c.b16 %v295, %v294
    %v313 = vpack.c.b16 %v297, %v296
    %330 = vmatprep.subr.bf16.mxu0 0
    %331 = vmatpush1.bf16.msra.mxu0 %v298
    %332 = vmatprep.subr.bf16.mxu0 0
    %333 = vmatpush1.bf16.msra.mxu0 %v299
    %334 = vmatprep.subr.bf16.mxu0 0
    %335 = vmatpush1.bf16.msra.mxu0 %v300
    %336 = vmatprep.subr.bf16.mxu0 0
    %337 = vmatpush1.bf16.msra.mxu0 %v301
    %338 = vmatprep.subr.bf16.mxu0 0
    %339 = vmatpush1.bf16.msra.mxu0 %v302
    %340 = vmatprep.subr.bf16.mxu0 0
    %341 = vmatpush1.bf16.msra.mxu0 %v303
    %342 = vmatprep.subr.bf16.mxu0 0
    %343 = vmatpush1.bf16.msra.mxu0 %v304
    %344 = vmatprep.subr.bf16.mxu0 0
    %345 = vmatpush1.bf16.msra.mxu0 %v305
    %346 = vmatprep.subr.bf16.mxu0 0
    %347 = vmatpush1.bf16.msra.mxu0 %v306
    %348 = vmatprep.subr.bf16.mxu0 0
    %349 = vmatpush1.bf16.msra.mxu0 %v307
    %350 = vmatprep.subr.bf16.mxu0 0
    %351 = vmatpush1.bf16.msra.mxu0 %v308
    %352 = vmatprep.subr.bf16.mxu0 0
    %353 = vmatpush1.bf16.msra.mxu0 %v309
    %354 = vmatprep.subr.bf16.mxu0 0
    %355 = vmatpush1.bf16.msra.mxu0 %v310
    %356 = vmatprep.subr.bf16.mxu0 0
    %357 = vmatpush1.bf16.msra.mxu0 %v311
    %358 = vmatprep.subr.bf16.mxu0 0
    %359 = vmatpush1.bf16.msra.mxu0 %v312
    %360 = vmatprep.subr.bf16.mxu0 0
    %361 = vmatpush1.bf16.msra.mxu0 %v313
    %362 = vmatprep.mubr.bf16.mxu0 %v195
    %363 = vmatmul.mubr.bf16.gmra.mrb[0].mxu0 %v194
    %v364 = vpop.f32.mrb[0].mxu0
    %v365 = vadd.f32 %v232, %v364
    %v366 = vpop.f32.mrb[0].mxu0
    %v367 = vpop.f32.mrb[0].mxu0
    %v368 = vpop.f32.mrb[0].mxu0
    %369 = vdwg.mxu0
    %v370 = vmax.f32 %v365, 0.0
    %v371 = vrot.slane %v370, 4
    %v372 = vadd.f32 %v370, %v371
    %v373 = vrot.slane %v372, 2
    %v374 = vadd.f32 %v372, %v373
    %v375 = vrot.slane %v374, 1
    %v376 = vadd.f32 %v374, %v375
    %v377 = vmul.f32 %v376, 0.125
    %v378 = vmul.f32 %v370, %v370
    %v379 = vrot.slane %v378, 4
    %v380 = vadd.f32 %v378, %v379
    %v381 = vrot.slane %v380, 2
    %v382 = vadd.f32 %v380, %v381
    %v383 = vrot.slane %v382, 1
    %v384 = vadd.f32 %v382, %v383
    %v385 = vmul.f32 %v384, 0.125
    %v386 = vmul.f32 %v377, %v377
    %v387 = vsub.f32 %v385, %v386
    %v388 = vmax.f32 %v387, 0.0
    %v389 = vadd.f32 %v388, 1e-05
    %v390 = vrsqrt.pop %v389
    %v391 = vmul.f32 %v60, %v390
    %v392 = vmul.f32 %v377, %v391
    %v393 = vsub.f32 %v61, %v392
    %v395 = vlaneseq
    %v396 = vshrl.u32 %v395, 7
    %v397 = vsub.s32 0, %v396
    %v398 = vrot.slane %v391, %v397
    %v400 = vmul.f32 %v370, %v398
    %v402 = vlaneseq
    %v403 = vshrl.u32 %v402, 7
    %v404 = vsub.s32 0, %v403
    %v405 = vrot.slane %v393, %v404
    %v407 = vadd.f32 %v400, %v405
    %408 = vst [vmem:[#allocation8] sm:$0xff] %v407
    // Predicated region
    $region30: #{tpu_custom_call.1} parent=1 // pred_check
      _
    $region31: #{tpu_custom_call.1} parent=1 // pred_check_branch
      %410 = sbr.rel (0) target = $region33
    $region32: #{tpu_custom_call.1} parent=1 // pred_region
      %s412 = ssub.s32 128, 128
      %413 = vsyncadd [#allocation4], %s412
      %s415 = sshll.u32 [#allocation8], 4
      %s416 = int_to_ptr.vmem [resolvable:$true] %s415
      %418 = dma.vmem_to_hbm [thread:$0]  %s416, 128, %s4, [#allocation4]
    $region33: #{tpu_custom_call.1} parent=1 // pred_fallthru
      _
    // Predicated region
    $region34: #{tpu_custom_call.1} parent=1 // pred_check
      _
    $region35: #{tpu_custom_call.1} parent=1 // pred_check_branch
      %420 = sbr.rel (0) target = $region37
    $region36: #{tpu_custom_call.1} parent=1 // pred_region
      %421 = dma.done [#allocation4], 128
    $region37: #{tpu_custom_call.1} parent=1 // pred_fallthru
      _
    %422 = vsyncpa [#allocation3], 1
    %423 = vsyncpa [#allocation6], 1
    %424 = vsyncpa [#allocation4], 1

</llo_original>
